<compile_context>
chip_gen: v6e
topology: v6e:2x2x1
jax: 0.10.0
libtpu: 0.0.40
codegen_flags: <defaults>
</compile_context>

<pallas_src>
import math

import jax
import jax.numpy as jnp
from jax.experimental import pallas as pl
from jax.experimental.pallas import tpu as pltpu


def _round_up(x, m):
    return ((x + m - 1) // m) * m


def _cdiv(a, b):
    return (a + b - 1) // b


def _vmem_capacity_bytes():
    """Physical VMEM of the attached TPU; conservative fallback if unknown."""
    try:
        info = pltpu.get_tpu_info()
        cap = getattr(info, "vmem_capacity_bytes", None)
        if cap:
            return int(cap)
    except Exception:
        pass
    return 64 * 1024 * 1024   # v7x-sized fallback: always safe, just smaller tiles


# ---------------------------------------------------------------------------
# Kernels
# ---------------------------------------------------------------------------
def ffn_kernel_acc(x_ref, w1_ref, b1_ref, w2_ref, b2_ref, o_ref, acc_ref):
    """d_ff split across grid axis 1; second matmul accumulates in f32."""
    k = pl.program_id(1)

    @pl.when(k == 0)
    def _():
        acc_ref[...] = jnp.zeros_like(acc_ref)

    h = jnp.dot(x_ref[...], w1_ref[...], preferred_element_type=jnp.float32)
    h = h + b1_ref[...]
    # TODO(synk): training-mode dropout (pltpu.prng_random_bits mask) not wired
    # in; eval-mode dropout == identity, matching module.eval() semantics.
    acc_ref[...] += jnp.dot(h.astype(w2_ref.dtype), w2_ref[...],
                            preferred_element_type=jnp.float32)

    @pl.when(k == pl.num_programs(1) - 1)
    def _():
        o_ref[...] = (acc_ref[...] + b2_ref[...]).astype(o_ref.dtype)


def ffn_kernel_single(x_ref, w1_ref, b1_ref, w2_ref, b2_ref, o_ref):
    """d_ff fits a single tile: no accumulator scratch / f32 round trip."""
    h = jnp.dot(x_ref[...], w1_ref[...], preferred_element_type=jnp.float32)
    h = h + b1_ref[...]
    # TODO(synk): training-mode dropout not implemented (eval-mode identity).
    o_ref[...] = (jnp.dot(h.astype(w2_ref.dtype), w2_ref[...],
                          preferred_element_type=jnp.float32)
                  + b2_ref[...]).astype(o_ref.dtype)


# ---------------------------------------------------------------------------
# Wrapper
# ---------------------------------------------------------------------------
def _block_spec(block_shape, index_map, *, buffers=None):
    """BlockSpec; optionally request an explicit VMEM buffer count."""
    if buffers is not None and hasattr(pl, "Buffered"):
        try:
            return pl.BlockSpec(block_shape, index_map,
                                pipeline_mode=pl.Buffered(buffers))
        except TypeError:   # older JAX without pipeline_mode kwarg
            pass
    return pl.BlockSpec(block_shape, index_map)


def _pick_token_tile(M, tile_m, sub):
    """Balanced token tile: M_pad ~ M, dtype/MXU-friendly granularity."""
    n_m = max(1, _cdiv(M, tile_m))
    if n_m == 1 and M > 512:
        n_m = 2                       # keep both v7x TensorCores busy
    tm = _cdiv(M, n_m)
    gran = 256 if tm >= 1024 else (128 if tm >= 128 else sub)
    return _round_up(tm, gran)


def feed_forward_block(x, w1, b1, w2, b2, *, tile_m=None, tile_ff=None,
                       compute_dtype=jnp.bfloat16, weight_buffers=None,
                       vmem_limit_bytes=None):
    """FeedForwardBlock forward: (x @ W1 + b1) @ W2 + b2 (eval-mode dropout).

    x: (B, S, d_model); W1: (d_model, d_ff); W2: (d_ff, d_model).
    x/W1/W2 are cast to `compute_dtype` (bf16 by default) for the MXU while
    accumulation stays f32.  Pass compute_dtype=None to keep input dtypes.
    """
    B, S, d_model = x.shape
    d_ff = w1.shape[1]
    M = B * S

    in_dtype = jnp.dtype(compute_dtype) if compute_dtype is not None else jnp.dtype(x.dtype)
    out_dtype = x.dtype
    in_itemsize = in_dtype.itemsize
    out_itemsize = jnp.dtype(out_dtype).itemsize
    sub = max(8, 32 // in_itemsize)   # sublane multiple: 8 f32 / 16 bf16 / 32 int8

    # --- per-chip VMEM budget (scoped limit set explicitly) -----------------
    budget = int(0.8 * _vmem_capacity_bytes())
    if vmem_limit_bytes is None:
        vmem_limit_bytes = budget

    # --- token tile (primary knob) -------------------------------------------
    if tile_m is None:
        tile_m = 1024     # above the bf16 HBM weight-stream ridge on v6e
    tm = _pick_token_tile(M, tile_m, sub)

    # --- d_ff tile from the VMEM budget (incl. h = x@W1 intermediate) --------
    wbufs = 2 if weight_buffers is None else weight_buffers
    while True:
        # x + out double-buffered + f32 accumulator (conservative)
        fixed = tm * d_model * (2 * in_itemsize + 2 * out_itemsize + 4)
        # W1 + W2 per tff-unit (wbufs-deep) + h in f32 and its cast copy
        per_tff = 2 * wbufs * d_model * in_itemsize + tm * (4 + in_itemsize)
        max_tff = max(0, (budget - fixed) // max(per_tff, 1))
        if max_tff >= min(d_ff, 128) or tm <= sub:
            break
        tm = max(sub, _round_up(tm // 2, sub))   # shrink tokens before starving d_ff

    tff_target = min(tile_ff if tile_ff is not None else 2048,
                     max(max_tff, 1), d_ff)
    if tff_target >= d_ff:
        n_k, tff, dff_pad = 1, d_ff, d_ff
    else:
        n_k = _cdiv(d_ff, max(tff_target, 128))
        tff = _round_up(_cdiv(d_ff, n_k), 128)    # balanced: <=127 lanes padding
        n_k = _cdiv(d_ff, tff)
        dff_pad = n_k * tff

    n_m = _cdiv(M, tm)
    M_pad = n_m * tm

    # --- cast + pad (zero-padded weight rows/cols contribute nothing) --------
    x2 = x.reshape(M, d_model)
    if compute_dtype is not None:
        x2 = x2.astype(in_dtype)
        w1 = w1.astype(in_dtype)
        w2 = w2.astype(in_dtype)
    b1f = b1.astype(jnp.float32)
    b2f = b2.astype(jnp.float32)

    if M_pad != M:
        x2 = jnp.pad(x2, ((0, M_pad - M), (0, 0)))
    if dff_pad != d_ff:
        w1 = jnp.pad(w1, ((0, 0), (0, dff_pad - d_ff)))
        b1f = jnp.pad(b1f, ((0, dff_pad - d_ff),))
        w2 = jnp.pad(w2, ((0, dff_pad - d_ff), (0, 0)))
    b1_2 = b1f.reshape(1, dff_pad)
    b2_2 = b2f.reshape(1, d_model)

    # --- honest cost estimate (weights re-streamed once per token tile) ------
    w_bytes = in_itemsize * 2 * d_model * dff_pad
    cost = pl.CostEstimate(
        flops=int(4 * M_pad * d_model * dff_pad),
        transcendentals=0,
        bytes_accessed=int(in_itemsize * M_pad * d_model
                           + out_itemsize * M_pad * d_model
                           + n_m * w_bytes
                           + 4 * (dff_pad + d_model)))

    # --- specs ----------------------------------------------------------------
    inv = (n_k == 1)                      # weights grid-invariant -> 1 buffer
    w_buf = 1 if inv else weight_buffers  # None -> default 2-deep pipelining
    in_specs = [
        pl.BlockSpec((tm, d_model), lambda i, k: (i, 0)),                       # x
        _block_spec((d_model, tff), lambda i, k: (0, k), buffers=w_buf),        # W1
        _block_spec((1, tff), lambda i, k: (0, k), buffers=1 if inv else None),  # b1
        _block_spec((tff, d_model), lambda i, k: (k, 0), buffers=w_buf),        # W2
        _block_spec((1, d_model), lambda i, k: (0, 0), buffers=1),              # b2
    ]

    if n_k == 1:
        kernel = ffn_kernel_single
        scratch = []
    else:
        kernel = ffn_kernel_acc
        scratch = [pltpu.VMEM((tm, d_model), jnp.float32)]

    grid_spec = pltpu.PrefetchScalarGridSpec(
        num_scalar_prefetch=0,
        grid=(n_m, n_k),
        in_specs=in_specs,
        out_specs=pl.BlockSpec((tm, d_model), lambda i, k: (i, 0)),
        scratch_shapes=scratch,
    )

    out = pl.pallas_call(
        kernel,
        out_shape=jax.ShapeDtypeStruct((M_pad, d_model), out_dtype),
        grid_spec=grid_spec,
        compiler_params=pltpu.CompilerParams(
            dimension_semantics=("parallel", "arbitrary"),
            vmem_limit_bytes=int(vmem_limit_bytes)),
        cost_estimate=cost,
    )(x2, w1, b1_2, w2, b2_2)

    return out[:M].reshape(B, S, d_model)


def init_params(key, d_model, d_ff, dtype=jnp.float32):
    """Deterministic init mimicking nn.Linear (uniform +-1/sqrt(fan_in))."""
    k1, k2, k3, k4 = jax.random.split(key, 4)
    bound1 = 1.0 / math.sqrt(d_model)
    bound2 = 1.0 / math.sqrt(d_ff)
    # stored already transposed: (in, out)
    w1 = jax.random.uniform(k1, (d_model, d_ff), dtype, -bound1, bound1)
    b1 = jax.random.uniform(k2, (d_ff,), dtype, -bound1, bound1)
    w2 = jax.random.uniform(k3, (d_ff, d_model), dtype, -bound2, bound2)
    b2 = jax.random.uniform(k4, (d_model,), dtype, -bound2, bound2)
    return w1, b1, w2, b2


if __name__ == "__main__":
    key = jax.random.PRNGKey(0)
    kx, kp, kx2, kp2 = jax.random.split(key, 4)

    # --- Test 1: module-spec shapes, default bf16 compute path --------------
    batch, seq, d_model, d_ff = 2, 8, 32, 64
    x = jax.random.normal(kx, (batch, seq, d_model), jnp.float32)
    w1, b1, w2, b2 = init_params(kp, d_model, d_ff)

    out = jax.block_until_ready(feed_forward_block(x, w1, b1, w2, b2))
    ref = ((x.reshape(-1, d_model) @ w1 + b1) @ w2 + b2).reshape(batch, seq, d_model)
    assert out.shape == (batch, seq, d_model)
    rel = jnp.max(jnp.abs(out - ref)) / (jnp.max(jnp.abs(ref)) + 1e-6)
    assert rel < 2.5e-2, f"bf16 path relative error too high: {rel}"

    # --- Test 2: d_ff reduction, balanced tiling and both padding paths -----
    # Full f32 so an accumulation-order / bias-per-chunk bug is caught tightly.
    batch2, seq2, dm2, dff2 = 2, 70, 128, 320
    xb = jax.random.normal(kx2, (batch2, seq2, dm2), jnp.float32)
    w1b, b1b, w2b, b2b = init_params(kp2, dm2, dff2)

    out_b = jax.block_until_ready(
        feed_forward_block(xb, w1b, b1b, w2b, b2b,
                           tile_m=64, tile_ff=128, compute_dtype=None))
    ref_b = ((xb.reshape(-1, dm2) @ w1b + b1b) @ w2b + b2b).reshape(batch2, seq2, dm2)
    rel_b = jnp.max(jnp.abs(out_b - ref_b)) / (jnp.max(jnp.abs(ref_b)) + 1e-6)
    assert rel_b < 1e-4, f"f32 path relative error too high: {rel_b}"

    print("KERNEL_OK")
</pallas_src>

<mosaic_0001>
module attributes {stable_mosaic.version = 11 : i64} {
  func.func @ffn_kernel_single(%arg0: i32, %arg1: i32, %arg2: memref<16x32xbf16, #tpu.memory_space<vmem>>, %arg3: memref<32x64xbf16, #tpu.memory_space<vmem>>, %arg4: memref<1x64xf32, #tpu.memory_space<vmem>>, %arg5: memref<64x32xbf16, #tpu.memory_space<vmem>>, %arg6: memref<1x32xf32, #tpu.memory_space<vmem>>, %arg7: memref<16x32xf32, #tpu.memory_space<vmem>>) attributes {dimension_semantics = [#tpu.dimension_semantics<parallel>, #tpu.dimension_semantics<arbitrary>], iteration_bounds = array<i64: 1, 1>, scalar_prefetch = 0 : i64, scratch_operands = 0 : i64, tpu.core_type = #tpu.core_type<tc>, window_params = [{transform_indices = @transform_0, window_bounds = array<i64: 16, 32>}, {pipeline_mode = #tpu.pipeline_mode<synchronous>, transform_indices = @transform_1, window_bounds = array<i64: 32, 64>}, {pipeline_mode = #tpu.pipeline_mode<synchronous>, transform_indices = @transform_2, window_bounds = array<i64: 1, 64>}, {pipeline_mode = #tpu.pipeline_mode<synchronous>, transform_indices = @transform_3, window_bounds = array<i64: 64, 32>}, {pipeline_mode = #tpu.pipeline_mode<synchronous>, transform_indices = @transform_4, window_bounds = array<i64: 1, 32>}, {transform_indices = @transform_5, window_bounds = array<i64: 16, 32>}]} {
    %c0 = arith.constant 0 : index
    %c0_0 = arith.constant 0 : index
    %0 = vector.load %arg2[%c0, %c0_0] : memref<16x32xbf16, #tpu.memory_space<vmem>>, vector<16x32xbf16>
    %c0_1 = arith.constant 0 : index
    %c0_2 = arith.constant 0 : index
    %1 = vector.load %arg3[%c0_1, %c0_2] : memref<32x64xbf16, #tpu.memory_space<vmem>>, vector<32x64xbf16>
    %cst = arith.constant dense<0.000000e+00> : vector<16x64xf32>
    %2 = tpu.matmul %0, %1, %cst {dimension_numbers = #tpu.dot_dimension_numbers<[1], [0], [0], [1], [0, 0, 1, 1], [], []>} : vector<16x32xbf16>, vector<32x64xbf16>, vector<16x64xf32> -> vector<16x64xf32>
    %c0_3 = arith.constant 0 : index
    %c0_4 = arith.constant 0 : index
    %3 = vector.load %arg4[%c0_3, %c0_4] : memref<1x64xf32, #tpu.memory_space<vmem>>, vector<1x64xf32>
    %4 = vector.broadcast %3 : vector<1x64xf32> to vector<16x64xf32>
    %5 = arith.addf %2, %4 : vector<16x64xf32>
    %6 = arith.truncf %5 : vector<16x64xf32> to vector<16x64xbf16>
    %c0_5 = arith.constant 0 : index
    %c0_6 = arith.constant 0 : index
    %7 = vector.load %arg5[%c0_5, %c0_6] : memref<64x32xbf16, #tpu.memory_space<vmem>>, vector<64x32xbf16>
    %cst_7 = arith.constant dense<0.000000e+00> : vector<16x32xf32>
    %8 = tpu.matmul %6, %7, %cst_7 {dimension_numbers = #tpu.dot_dimension_numbers<[1], [0], [0], [1], [0, 0, 1, 1], [], []>} : vector<16x64xbf16>, vector<64x32xbf16>, vector<16x32xf32> -> vector<16x32xf32>
    %c0_8 = arith.constant 0 : index
    %c0_9 = arith.constant 0 : index
    %9 = vector.load %arg6[%c0_8, %c0_9] : memref<1x32xf32, #tpu.memory_space<vmem>>, vector<1x32xf32>
    %10 = vector.broadcast %9 : vector<1x32xf32> to vector<16x32xf32>
    %11 = arith.addf %8, %10 : vector<16x32xf32>
    %c0_10 = arith.constant 0 : index
    %c0_11 = arith.constant 0 : index
    %12 = vector.load %arg7[%c0_10, %c0_11] : memref<16x32xf32, #tpu.memory_space<vmem>>, vector<16x32xf32>
    tpu.vector_store %arg7[%c0_10, %c0_11], %11 {strides = array<i32>} : memref<16x32xf32, #tpu.memory_space<vmem>>, vector<16x32xf32>,
    return
  }
  func.func @transform_0(%arg0: i32, %arg1: i32) -> (i32, i32) {
    %c0_i32 = arith.constant 0 : i32
    %c0_i32_0 = arith.constant 0 : i32
    return %arg0, %c0_i32 : i32, i32
  }
  func.func @transform_1(%arg0: i32, %arg1: i32) -> (i32, i32) {
    %c0_i32 = arith.constant 0 : i32
    %c0_i32_0 = arith.constant 0 : i32
    return %c0_i32, %arg1 : i32, i32
  }
  func.func @transform_2(%arg0: i32, %arg1: i32) -> (i32, i32) {
    %c0_i32 = arith.constant 0 : i32
    %c0_i32_0 = arith.constant 0 : i32
    return %c0_i32, %arg1 : i32, i32
  }
  func.func @transform_3(%arg0: i32, %arg1: i32) -> (i32, i32) {
    %c0_i32 = arith.constant 0 : i32
    %c0_i32_0 = arith.constant 0 : i32
    return %arg1, %c0_i32 : i32, i32
  }
  func.func @transform_4(%arg0: i32, %arg1: i32) -> (i32, i32) {
    %c0_i32 = arith.constant 0 : i32
    %c0_i32_0 = arith.constant 0 : i32
    %c0_i32_1 = arith.constant 0 : i32
    return %c0_i32, %c0_i32_0 : i32, i32
  }
  func.func @transform_5(%arg0: i32, %arg1: i32) -> (i32, i32) {
    %c0_i32 = arith.constant 0 : i32
    %c0_i32_0 = arith.constant 0 : i32
    return %arg0, %c0_i32 : i32, i32
  }
}

</mosaic_0001>

<llo_original>
// kernel: tpu_custom_call.1
$region0: #{tpu_custom_call.1}
  #allocation0 [shape = 'u32[]', space=smem, size = 0x4, offset = 0x4, fixed_abs, tag = 'smem constant byte address 0x4 - core index']
  #allocation1 [shape = 'u32[144,128]{1,0:T(1,128)}', space=vmem, size = 0x12000, scoped, tag = 'internal scratch']
  %s0 = inlined_call_operand.vmem [shape: bf16[16,32], index: 0, kind: input, shape index: {}]
  %s1 = inlined_call_operand.vmem [shape: bf16[32,64], index: 1, kind: input, shape index: {}]
  %s2 = inlined_call_operand.vmem [shape: f32[1,64], index: 2, kind: input, shape index: {}]
  %s3 = inlined_call_operand.vmem [shape: bf16[64,32], index: 3, kind: input, shape index: {}]
  %s4 = inlined_call_operand.vmem [shape: f32[1,32], index: 4, kind: input, shape index: {}]
  %s5 = inlined_call_operand.hbm [shape: f32[16,32], index: 5, kind: output, shape index: {}]
  %s6 = sld [smem:[#allocation0]]
  $region30: #{tpu_custom_call.1} parent=0
    _
  %s8 = ssub.s32 1, %s6
  %s9 = scalar_select 0, %s8, %s6
  $region1: #{tpu_custom_call.1} parent=0
    #allocation2 [shape = 'u8[8192]{0}', space=vmem, size = 0x2000, scoped, tag = 'output window, operand 0, single buffered']
    #allocation3 [shape = 's32[1]{0}', space=sflag, size = 0x4, scoped, tag = 'scoped memory for tpu_custom_call.1']
    %10 = vsyncpa [#allocation3], 0
    // Predicated region
    $region2: #{tpu_custom_call.1} parent=1 // pred_check
      _
    $region3: #{tpu_custom_call.1} parent=1 // pred_check_branch
      %12 = sbr.rel (0) target = $region5
    $region4: #{tpu_custom_call.1} parent=1 // pred_region
      _
    $region5: #{tpu_custom_call.1} parent=1 // pred_fallthru
      _
    // Predicated region
    $region6: #{tpu_custom_call.1} parent=1 // pred_check
      _
    $region7: #{tpu_custom_call.1} parent=1 // pred_check_branch
      %14 = sbr.rel (0) target = $region9
    $region8: #{tpu_custom_call.1} parent=1 // pred_region
      _
    $region9: #{tpu_custom_call.1} parent=1 // pred_fallthru
      _
    // Predicated region
    $region10: #{tpu_custom_call.1} parent=1 // pred_check
      _
    $region11: #{tpu_custom_call.1} parent=1 // pred_check_branch
      %16 = sbr.rel (0) target = $region13
    $region12: #{tpu_custom_call.1} parent=1 // pred_region
      _
    $region13: #{tpu_custom_call.1} parent=1 // pred_fallthru
      _
    // Predicated region
    $region14: #{tpu_custom_call.1} parent=1 // pred_check
      _
    $region15: #{tpu_custom_call.1} parent=1 // pred_check_branch
      %18 = sbr.rel (0) target = $region17
    $region16: #{tpu_custom_call.1} parent=1 // pred_region
      _
    $region17: #{tpu_custom_call.1} parent=1 // pred_fallthru
      _
    // Predicated region
    $region18: #{tpu_custom_call.1} parent=1 // pred_check
      _
    $region19: #{tpu_custom_call.1} parent=1 // pred_check_branch
      %20 = sbr.rel (0) target = $region21
    $region20: #{tpu_custom_call.1} parent=1 // pred_region
      _
    $region21: #{tpu_custom_call.1} parent=1 // pred_fallthru
      _
    %v22 = vld [vmem:[%s0] sm:$0xf]
    %v23 = vld [vmem:[%s0 + $0x4] sm:$0xf]
    %v24 = vld [vmem:[%s1] sm:$0xf]
    %v25 = vld [vmem:[%s1 + $0x4] sm:$0xf]
    %v26 = vld [vmem:[%s1 + $0x8] sm:$0xf]
    %v27 = vld [vmem:[%s1 + $0xc] sm:$0xf]
    %v28 = vld [vmem:[%s2] sm:$0x1]
    %v30 = vlaneseq
    %v31 = vshrl.u32 %v30, 7
    %v32 = vsub.s32 0, %v31
    %v33 = vrot.slane %v28, %v32
    %v37 = vunpack.c.l.b16 %v22
    %v38 = vunpack.c.l.b16 %v23
    %v39 = vpack.c.b16 %v38, %v37
    %v44 = vunpack.c.l.b16 %v24
    %v45 = vunpack.c.l.b16 %v25
    %v46 = vunpack.c.l.b16 %v26
    %v47 = vunpack.c.l.b16 %v27
    %v48 = vpack.c.b16 %v45, %v44
    %v49 = vpack.c.b16 %v47, %v46
    %vm52 = vcmask 261120
    %v54 = vsel %vm52, %v39, 0
    %56 = vmatprep.subr.bf16.mxu0 0
    %57 = vmatpush1.bf16.msra.mxu0 0
    %58 = vmatprep.subr.bf16.mxu0 0
    %59 = vmatpush1.bf16.msra.mxu0 0
    %60 = vmatprep.subr.bf16.mxu0 0
    %61 = vmatpush1.bf16.msra.mxu0 0
    %62 = vmatprep.subr.bf16.mxu0 0
    %63 = vmatpush1.bf16.msra.mxu0 0
    %64 = vmatprep.subr.bf16.mxu0 0
    %65 = vmatpush1.bf16.msra.mxu0 0
    %66 = vmatprep.subr.bf16.mxu0 0
    %67 = vmatpush1.bf16.msra.mxu0 0
    %68 = vmatprep.subr.bf16.mxu0 0
    %69 = vmatpush1.bf16.msra.mxu0 %v49
    %70 = vmatprep.subr.bf16.mxu0 0
    %71 = vmatpush1.bf16.msra.mxu0 %v48
    %72 = vmatprep.subr.bf16.mxu0 0
    %73 = vmatpush2.bf16.msra.mxu0 0
    %74 = vmatprep.subr.bf16.mxu0 0
    %75 = vmatpush2.bf16.msra.mxu0 0
    %76 = vmatprep.subr.bf16.mxu0 0
    %77 = vmatpush2.bf16.msra.mxu0 0
    %78 = vmatprep.subr.bf16.mxu0 0
    %79 = vmatpush2.bf16.msra.mxu0 0
    %80 = vmatprep.subr.bf16.mxu0 0
    %81 = vmatpush2.bf16.msra.mxu0 0
    %82 = vmatprep.subr.bf16.mxu0 0
    %83 = vmatpush2.bf16.msra.mxu0 0
    %84 = vmatprep.subr.bf16.mxu0 0
    %85 = vmatpush2.bf16.msra.mxu0 0
    %86 = vmatprep.subr.bf16.mxu0 0
    %87 = vmatpush2.bf16.msra.mxu0 0
    %88 = vmatprep.mubr.bf16.mxu0 0
    %89 = vmatmul.mubr.bf16.gmra.mxu0 %v54
    %v90 = vpop.f32.mrf.mxu0
    %v91 = vadd.f32 %v33, %v90
    %v92 = vpop.f32.mrf.mxu0
    %v93 = vpop.f32.mrf.mxu0
    %v94 = vadd.f32 %v33, %v93
    %v95 = vpop.f32.mrf.mxu0
    %96 = vdwg.mxu0
    %v97 = vpack.c.bf16 %v94, %v91
    %v98 = vld [vmem:[%s3] sm:$0xf]
    %v99 = vld [vmem:[%s3 + $0x4] sm:$0xf]
    %v100 = vld [vmem:[%s3 + $0x8] sm:$0xf]
    %v101 = vld [vmem:[%s3 + $0xc] sm:$0xf]
    %v102 = vld [vmem:[%s3 + $0x10] sm:$0xf]
    %v103 = vld [vmem:[%s3 + $0x14] sm:$0xf]
    %v104 = vld [vmem:[%s3 + $0x18] sm:$0xf]
    %v105 = vld [vmem:[%s3 + $0x1c] sm:$0xf]
    %v106 = vld [vmem:[%s4] sm:$0x1]
    %v108 = vlaneseq
    %v109 = vshrl.u32 %v108, 7
    %v110 = vsub.s32 0, %v109
    %v111 = vrot.slane %v106, %v110
    %v121 = vunpack.c.l.b16 %v98
    %v122 = vunpack.c.l.b16 %v99
    %v123 = vunpack.c.l.b16 %v100
    %v124 = vunpack.c.l.b16 %v101
    %v125 = vunpack.c.l.b16 %v102
    %v126 = vunpack.c.l.b16 %v103
    %v127 = vunpack.c.l.b16 %v104
    %v128 = vunpack.c.l.b16 %v105
    %v129 = vpack.c.b16 %v122, %v121
    %v130 = vpack.c.b16 %v124, %v123
    %v131 = vpack.c.b16 %v126, %v125
    %v132 = vpack.c.b16 %v128, %v127
    %vm137 = vcmask 523264
    %v139 = vsel %vm137, %v97, 0
    %141 = vmatprep.subr.bf16.mxu0 0
    %142 = vmatpush1.bf16.msra.mxu0 0
    %143 = vmatprep.subr.bf16.mxu0 0
    %144 = vmatpush1.bf16.msra.mxu0 0
    %145 = vmatprep.subr.bf16.mxu0 0
    %146 = vmatpush1.bf16.msra.mxu0 0
    %147 = vmatprep.subr.bf16.mxu0 0
    %148 = vmatpush1.bf16.msra.mxu0 0
    %149 = vmatprep.subr.bf16.mxu0 0
    %150 = vmatpush1.bf16.msra.mxu0 %v132
    %151 = vmatprep.subr.bf16.mxu0 0
    %152 = vmatpush1.bf16.msra.mxu0 %v131
    %153 = vmatprep.subr.bf16.mxu0 0
    %154 = vmatpush1.bf16.msra.mxu0 %v130
    %155 = vmatprep.subr.bf16.mxu0 0
    %156 = vmatpush1.bf16.msra.mxu0 %v129
    %157 = vmatprep.subr.bf16.mxu0 0
    %158 = vmatpush2.bf16.msra.mxu0 0
    %159 = vmatprep.subr.bf16.mxu0 0
    %160 = vmatpush2.bf16.msra.mxu0 0
    %161 = vmatprep.subr.bf16.mxu0 0
    %162 = vmatpush2.bf16.msra.mxu0 0
    %163 = vmatprep.subr.bf16.mxu0 0
    %164 = vmatpush2.bf16.msra.mxu0 0
    %165 = vmatprep.subr.bf16.mxu0 0
    %166 = vmatpush2.bf16.msra.mxu0 0
    %167 = vmatprep.subr.bf16.mxu0 0
    %168 = vmatpush2.bf16.msra.mxu0 0
    %169 = vmatprep.subr.bf16.mxu0 0
    %170 = vmatpush2.bf16.msra.mxu0 0
    %171 = vmatprep.subr.bf16.mxu0 0
    %172 = vmatpush2.bf16.msra.mxu0 0
    %173 = vmatprep.mubr.bf16.mxu0 0
    %174 = vmatmul.mubr.bf16.gmra.mxu0 %v139
    %v175 = vpop.f32.mrf.mxu0
    %v176 = vadd.f32 %v111, %v175
    %v177 = vpop.f32.mrf.mxu0
    %v178 = vpop.f32.mrf.mxu0
    %v179 = vadd.f32 %v111, %v178
    %v180 = vpop.f32.mrf.mxu0
    %181 = vdwg.mxu0
    %182 = vst.msk [vmem:[#allocation2] sm:$0xff] %vm52, %v176
    %183 = vst.msk [vmem:[#allocation2 + $0x8] sm:$0xff] %vm52, %v179
    // Predicated region
    $region22: #{tpu_custom_call.1} parent=1 // pred_check
      _
    $region23: #{tpu_custom_call.1} parent=1 // pred_check_branch
      %185 = sbr.rel (0) target = $region25
    $region24: #{tpu_custom_call.1} parent=1 // pred_region
      %s187 = ssub.s32 256, 256
      %188 = vsyncadd [#allocation3], %s187
      %s189 = sshll.u32 [#allocation2], 4
      %s190 = int_to_ptr.vmem [resolvable:$true] %s189
      %195 = dma.vmem_to_hbm [thread:$0]  %s190, 256, %s5, [#allocation3], 128, 128, 8
    $region25: #{tpu_custom_call.1} parent=1 // pred_fallthru
      _
    // Predicated region
    $region26: #{tpu_custom_call.1} parent=1 // pred_check
      _
    $region27: #{tpu_custom_call.1} parent=1 // pred_check_branch
      %197 = sbr.rel (0) target = $region29
    $region28: #{tpu_custom_call.1} parent=1 // pred_region
      %198 = dma.done [#allocation3], 256
    $region29: #{tpu_custom_call.1} parent=1 // pred_fallthru
      _
    %199 = vsyncpa [#allocation3], 1

</llo_original>
